<compile_context>
chip_gen: v6e
topology: v6e:2x2x1
jax: 0.10.0
libtpu: 0.0.40
codegen_flags: <defaults>
</compile_context>

<pallas_src>
import jax
import jax.numpy as jnp
from jax import lax
from jax.experimental import pallas as pl
from jax.experimental.pallas import tpu as pltpu


def _cdiv(a, b):
    return -(-a // b)


def _round_up(x, m):
    return _cdiv(x, m) * m


def _tpu_budget():
    """Returns (tb_cap, vmem_limit_bytes) from the detected VMEM capacity.

    Budget math (per pipeline buffer, f32):
      x tile (TB, 10) -> lane-padded (TB, 128) = TB * 512 B   (x2 buffers)
      y tile (1,  TB) -> sublane-padded (8,TB) = TB *  32 B   (x2 buffers)
      + a few MiB of per-chunk intermediates and the (tiny) weights.
    TB = 49152 -> ~54 MiB worst case (fits v5e/v6e comfortably, and still fits a
    64 MiB core even if detection overstates capacity); TB = 32768 -> ~38 MiB.
    """
    try:
        vmem = int(pltpu.get_tpu_info().vmem_capacity_bytes)
    except Exception:
        # Non-TPU trace / older jax: assume the smallest (v7x per-core) VMEM.
        vmem = 64 * 1024 * 1024
    if vmem >= 100 * 1024 * 1024:
        # v5e / v6e: 128 MiB physical VMEM.
        return 49152, 96 * 1024 * 1024
    # v7x (64 MiB per TensorCore) and conservative fallback.
    return 32768, 48 * 1024 * 1024


def _make_mlp_kernel(tb, chunk):
    n_chunks = tb // chunk

    def mlp_kernel(x_ref, w1_ref, b1_ref, w2_ref, b2_ref, o_ref):
        # x_ref : (TB, 10)  batch on sublanes, features on lanes
        # w1_ref: (10, 10)  PyTorch layout (out_features, in_features)
        # b1_ref: (10, 1)
        # w2_ref: (1, 10)   PyTorch layout
        # b2_ref: (1, 1)
        # o_ref : (1, TB)   lane-dense output tile
        w1 = w1_ref[...]
        b1 = b1_ref[...]
        w2 = w2_ref[...]
        b2 = b2_ref[...]
        for c in range(n_chunks):  # static unroll, TB/chunk <= 12
            xs = x_ref[pl.ds(c * chunk, chunk), :]            # (chunk, 10)
            # fc1 + ReLU: h = relu(W1 @ xs^T + b1) -> (10, chunk).  Contracting
            # the feature axis of both operands keeps the batch on the lane axis
            # without an explicit XLU transpose of the batch tile.
            h = lax.dot_general(w1, xs, (((1,), (1,)), ((), ())),
                                preferred_element_type=jnp.float32)
            h = jnp.maximum(h + b1, 0.0)                      # (10, chunk)
            # fc2 + ReLU: y = relu(W2 @ h + b2) -> (1, chunk), lane-dense.
            y = lax.dot_general(w2, h, (((1,), (0,)), ((), ())),
                                preferred_element_type=jnp.float32)
            y = jnp.maximum(y + b2, 0.0)                      # (1, chunk)
            o_ref[:, pl.ds(c * chunk, chunk)] = y.astype(o_ref.dtype)

    return mlp_kernel


@jax.jit
def digitsum_image_rho(x, w1, b1, w2, b2):
    """Forward pass of DigitSumImageRho.

    Args:
      x : (B, 10) float32
      w1: (10, 10) float32, PyTorch layout (out_features, in_features)
      b1: (10,)    float32
      w2: (1, 10)  float32, PyTorch layout
      b2: (1,)     float32
    Returns:
      (B, 1) float32
    """
    B, F = x.shape
    H = w1.shape[0]   # hidden = 10
    O = w2.shape[0]   # out = 1

    tb_cap, vmem_limit = _tpu_budget()

    if B <= 4096:
        # Tiny batches: pad to a 512-row multiple (negligible copy), single tile.
        b_eff = max(_round_up(B, 512), 512)
        tb = b_eff
        if b_eff != B:
            x = jnp.pad(x, ((0, b_eff - B), (0, 0)))
    else:
        # Large batches: no padding, no wrapper copy.  At least 2 tiles so the
        # "parallel" batch axis can be split across TensorCores; the ragged last
        # tile is handled by clamped edge-block DMA + masked output stores.
        b_eff = B
        nt = max(2, _cdiv(B, tb_cap))
        tb = min(_round_up(_cdiv(B, nt), 4096), tb_cap)
    chunk = min(tb, 4096)
    num_tiles = _cdiv(b_eff, tb)

    b1c = b1.reshape(H, 1)
    b2c = b2.reshape(O, 1)

    out = pl.pallas_call(
        _make_mlp_kernel(tb, chunk),
        out_shape=jax.ShapeDtypeStruct((1, b_eff), jnp.float32),
        grid_spec=pltpu.PrefetchScalarGridSpec(
            num_scalar_prefetch=0,
            grid=(num_tiles,),
            in_specs=[
                pl.BlockSpec((tb, F), lambda i: (i, 0)),   # x: batch-tiled, double-buffered
                pl.BlockSpec((H, F), lambda i: (0, 0)),    # w1: VMEM-resident (DMA'd once)
                pl.BlockSpec((H, 1), lambda i: (0, 0)),    # b1
                pl.BlockSpec((O, H), lambda i: (0, 0)),    # w2
                pl.BlockSpec((O, 1), lambda i: (0, 0)),    # b2
            ],
            out_specs=pl.BlockSpec((1, tb), lambda i: (0, i)),
        ),
        compiler_params=pltpu.CompilerParams(
            dimension_semantics=("parallel",),
            vmem_limit_bytes=vmem_limit,
        ),
    )(x, w1, b1c, w2, b2c)

    return out[0, :B].reshape(B, 1)


def _init_params(key):
    # Deterministic init mimicking nn.Linear defaults (uniform +-1/sqrt(fan_in)),
    # in PyTorch-native (out_features, in_features) layout.
    k1, k2, k3, k4 = jax.random.split(key, 4)
    bound = 1.0 / jnp.sqrt(10.0)
    w1 = jax.random.uniform(k1, (10, 10), jnp.float32, -bound, bound)
    b1 = jax.random.uniform(k2, (10,), jnp.float32, -bound, bound)
    w2 = jax.random.uniform(k3, (1, 10), jnp.float32, -bound, bound)
    b2 = jax.random.uniform(k4, (1,), jnp.float32, -bound, bound)
    return w1, b1, w2, b2


def _reference(x, w1, b1, w2, b2):
    h = jnp.maximum(x @ w1.T + b1, 0.0)
    return jnp.maximum(h @ w2.T + b2, 0.0)


if __name__ == "__main__":
    key = jax.random.PRNGKey(0)
    kx, kx2, kp = jax.random.split(key, 3)
    w1, b1, w2, b2 = _init_params(kp)

    # Small batch: single tile (pads internally to 512 rows).
    B = 8
    x = jax.random.normal(kx, (B, 10), jnp.float32)
    out = jax.block_until_ready(digitsum_image_rho(x, w1, b1, w2, b2))
    ref = _reference(x, w1, b1, w2, b2)
    assert out.shape == (B, 1)
    assert jnp.allclose(out, ref, atol=1e-4, rtol=1e-4), float(jnp.max(jnp.abs(out - ref)))

    # Ragged multi-tile batch: exercises the no-pad uneven-last-tile path and
    # the in-tile chunk loop (2 tiles of 8192 rows, last tile 808 valid rows).
    B2 = 9000
    x2 = jax.random.normal(kx2, (B2, 10), jnp.float32)
    out2 = jax.block_until_ready(digitsum_image_rho(x2, w1, b1, w2, b2))
    ref2 = _reference(x2, w1, b1, w2, b2)
    assert out2.shape == (B2, 1)
    assert jnp.allclose(out2, ref2, atol=1e-4, rtol=1e-4), float(jnp.max(jnp.abs(out2 - ref2)))

    print("KERNEL_OK")
</pallas_src>

<mosaic_0001>
module attributes {stable_mosaic.version = 11 : i64} {
  func.func @mlp_kernel(%arg0: i32, %arg1: memref<512x10xf32, #tpu.memory_space<vmem>>, %arg2: memref<10x10xf32, #tpu.memory_space<vmem>>, %arg3: memref<10x1xf32, #tpu.memory_space<vmem>>, %arg4: memref<1x10xf32, #tpu.memory_space<vmem>>, %arg5: memref<1x1xf32, #tpu.memory_space<vmem>>, %arg6: memref<1x512xf32, #tpu.memory_space<vmem>>) attributes {dimension_semantics = [#tpu.dimension_semantics<parallel>], iteration_bounds = array<i64: 1>, scalar_prefetch = 0 : i64, scratch_operands = 0 : i64, tpu.core_type = #tpu.core_type<tc>, window_params = [{transform_indices = @transform_0, window_bounds = array<i64: 512, 10>}, {pipeline_mode = #tpu.pipeline_mode<synchronous>, transform_indices = @transform_1, window_bounds = array<i64: 10, 10>}, {pipeline_mode = #tpu.pipeline_mode<synchronous>, transform_indices = @transform_2, window_bounds = array<i64: 10, 1>}, {pipeline_mode = #tpu.pipeline_mode<synchronous>, transform_indices = @transform_3, window_bounds = array<i64: 1, 10>}, {pipeline_mode = #tpu.pipeline_mode<synchronous>, transform_indices = @transform_4, window_bounds = array<i64: 1, 1>}, {transform_indices = @transform_5, window_bounds = array<i64: 1, 512>}]} {
    %c0 = arith.constant 0 : index
    %c0_0 = arith.constant 0 : index
    %0 = vector.load %arg2[%c0, %c0_0] : memref<10x10xf32, #tpu.memory_space<vmem>>, vector<10x10xf32>
    %c0_1 = arith.constant 0 : index
    %c0_2 = arith.constant 0 : index
    %1 = vector.load %arg3[%c0_1, %c0_2] : memref<10x1xf32, #tpu.memory_space<vmem>>, vector<10x1xf32>
    %c0_3 = arith.constant 0 : index
    %c0_4 = arith.constant 0 : index
    %2 = vector.load %arg4[%c0_3, %c0_4] : memref<1x10xf32, #tpu.memory_space<vmem>>, vector<1x10xf32>
    %c0_5 = arith.constant 0 : index
    %c0_6 = arith.constant 0 : index
    %3 = vector.load %arg5[%c0_5, %c0_6] : memref<1x1xf32, #tpu.memory_space<vmem>>, vector<1x1xf32>
    %c0_7 = arith.constant 0 : index
    %c0_8 = arith.constant 0 : index
    %4 = vector.load %arg1[%c0_7, %c0_8] : memref<512x10xf32, #tpu.memory_space<vmem>>, vector<512x10xf32>
    %cst = arith.constant dense<0.000000e+00> : vector<10x512xf32>
    %5 = tpu.matmul %0, %4, %cst {dimension_numbers = #tpu.dot_dimension_numbers<[1], [1], [0], [0], [0, 0, 1, 0], [], []>} : vector<10x10xf32>, vector<512x10xf32>, vector<10x512xf32> -> vector<10x512xf32>
    %6 = vector.broadcast %1 : vector<10x1xf32> to vector<10x512xf32>
    %7 = arith.addf %5, %6 : vector<10x512xf32>
    %cst_9 = arith.constant 0.000000e+00 : f32
    %8 = vector.broadcast %cst_9 : f32 to vector<10x512xf32>
    %9 = arith.maximumf %7, %8 : vector<10x512xf32>
    %cst_10 = arith.constant dense<0.000000e+00> : vector<1x512xf32>
    %10 = tpu.matmul %2, %9, %cst_10 {dimension_numbers = #tpu.dot_dimension_numbers<[1], [0], [0], [1], [0, 0, 1, 1], [], []>} : vector<1x10xf32>, vector<10x512xf32>, vector<1x512xf32> -> vector<1x512xf32>
    %11 = vector.broadcast %3 : vector<1x1xf32> to vector<1x512xf32>
    %12 = arith.addf %10, %11 : vector<1x512xf32>
    %cst_11 = arith.constant 0.000000e+00 : f32
    %13 = vector.broadcast %cst_11 : f32 to vector<1x512xf32>
    %14 = arith.maximumf %12, %13 : vector<1x512xf32>
    %c0_12 = arith.constant 0 : index
    %c0_13 = arith.constant 0 : index
    %15 = vector.load %arg6[%c0_12, %c0_13] : memref<1x512xf32, #tpu.memory_space<vmem>>, vector<1x512xf32>
    tpu.vector_store %arg6[%c0_12, %c0_13], %14 {strides = array<i32>} : memref<1x512xf32, #tpu.memory_space<vmem>>, vector<1x512xf32>,
    return
  }
  func.func @transform_0(%arg0: i32) -> (i32, i32) {
    %c0_i32 = arith.constant 0 : i32
    %c0_i32_0 = arith.constant 0 : i32
    return %arg0, %c0_i32 : i32, i32
  }
  func.func @transform_1(%arg0: i32) -> (i32, i32) {
    %c0_i32 = arith.constant 0 : i32
    %c0_i32_0 = arith.constant 0 : i32
    %c0_i32_1 = arith.constant 0 : i32
    return %c0_i32, %c0_i32_0 : i32, i32
  }
  func.func @transform_2(%arg0: i32) -> (i32, i32) {
    %c0_i32 = arith.constant 0 : i32
    %c0_i32_0 = arith.constant 0 : i32
    %c0_i32_1 = arith.constant 0 : i32
    return %c0_i32, %c0_i32_0 : i32, i32
  }
  func.func @transform_3(%arg0: i32) -> (i32, i32) {
    %c0_i32 = arith.constant 0 : i32
    %c0_i32_0 = arith.constant 0 : i32
    %c0_i32_1 = arith.constant 0 : i32
    return %c0_i32, %c0_i32_0 : i32, i32
  }
  func.func @transform_4(%arg0: i32) -> (i32, i32) {
    %c0_i32 = arith.constant 0 : i32
    %c0_i32_0 = arith.constant 0 : i32
    %c0_i32_1 = arith.constant 0 : i32
    return %c0_i32, %c0_i32_0 : i32, i32
  }
  func.func @transform_5(%arg0: i32) -> (i32, i32) {
    %c0_i32 = arith.constant 0 : i32
    %c0_i32_0 = arith.constant 0 : i32
    return %c0_i32, %arg0 : i32, i32
  }
}

</mosaic_0001>

<llo_original>
// kernel: digitsum_image_rho.1
$region0: #{digitsum_image_rho.1}
  #allocation0 [shape = 'u32[]', space=smem, size = 0x4, offset = 0x4, fixed_abs, tag = 'smem constant byte address 0x4 - core index']
  #allocation1 [shape = 'u32[144,128]{1,0:T(1,128)}', space=vmem, size = 0x12000, scoped, tag = 'internal scratch']
  #allocation2 [shape = 'f32[1,1]{1,0:T(1,128)S(1)}', space=vmem, size = 0x200, scoped, tag = 'scoped memory for digitsum_image_rho.1']
  %s0 = inlined_call_operand.vmem [shape: f32[512,10], index: 0, kind: input, shape index: {}]
  %s1 = inlined_call_operand.vmem [shape: f32[10,10], index: 1, kind: input, shape index: {}]
  %s2 = inlined_call_operand.vmem [shape: f32[10,1], index: 2, kind: input, shape index: {}]
  %s3 = inlined_call_operand.vmem [shape: f32[1,10], index: 3, kind: input, shape index: {}]
  %s4 = inlined_call_operand.<no memory space> [shape: f32[1,1], index: 4, kind: input, shape index: {}]
  %s5 = inlined_call_operand.vmem [shape: f32[1,512], index: 5, kind: output, shape index: {}]
  %s6 = sld [smem:[#allocation0]]
  $region30: #{digitsum_image_rho.1} parent=0
    _
  %s8 = ssub.s32 1, %s6
  %s9 = scalar_select 0, %s8, %s6
  %v10 = vstv %s4
  %11 = vst [vmem:[#allocation2] sm:$0x1] %v10
  // Predicated region
  $region2: #{digitsum_image_rho.1} parent=0 // pred_check
    _
  $region3: #{digitsum_image_rho.1} parent=0 // pred_check_branch
    %13 = sbr.rel (0) target = $region5
  $region4: #{digitsum_image_rho.1} parent=0 // pred_region
    _
  $region5: #{digitsum_image_rho.1} parent=0 // pred_fallthru
    _
  // Predicated region
  $region6: #{digitsum_image_rho.1} parent=0 // pred_check
    _
  $region7: #{digitsum_image_rho.1} parent=0 // pred_check_branch
    %15 = sbr.rel (0) target = $region9
  $region8: #{digitsum_image_rho.1} parent=0 // pred_region
    _
  $region9: #{digitsum_image_rho.1} parent=0 // pred_fallthru
    _
  // Predicated region
  $region10: #{digitsum_image_rho.1} parent=0 // pred_check
    _
  $region11: #{digitsum_image_rho.1} parent=0 // pred_check_branch
    %17 = sbr.rel (0) target = $region13
  $region12: #{digitsum_image_rho.1} parent=0 // pred_region
    _
  $region13: #{digitsum_image_rho.1} parent=0 // pred_fallthru
    _
  // Predicated region
  $region14: #{digitsum_image_rho.1} parent=0 // pred_check
    _
  $region15: #{digitsum_image_rho.1} parent=0 // pred_check_branch
    %19 = sbr.rel (0) target = $region17
  $region16: #{digitsum_image_rho.1} parent=0 // pred_region
    _
  $region17: #{digitsum_image_rho.1} parent=0 // pred_fallthru
    _
  // Predicated region
  $region18: #{digitsum_image_rho.1} parent=0 // pred_check
    _
  $region19: #{digitsum_image_rho.1} parent=0 // pred_check_branch
    %21 = sbr.rel (0) target = $region21
  $region20: #{digitsum_image_rho.1} parent=0 // pred_region
    _
  $region21: #{digitsum_image_rho.1} parent=0 // pred_fallthru
    _
  %v22 = vld [vmem:[%s1] sm:$0xff]
  %v23 = vld [vmem:[%s1 + $0x8] sm:$0x3]
  %v24 = vld [vmem:[%s2] sm:$0xff]
  %v25 = vld [vmem:[%s2 + $0x8] sm:$0x3]
  %v26 = vld [vmem:[%s3] sm:$0x1]
  %v27 = vld [vmem:[#allocation2] sm:$0x1]
  %v28 = vld [vmem:[%s0] sm:$0xff]
  %v29 = vld [vmem:[%s0 + $0x8] sm:$0xff]
  %v30 = vld [vmem:[%s0 + $0x10] sm:$0xff]
  %v31 = vld [vmem:[%s0 + $0x18] sm:$0xff]
  %v32 = vld [vmem:[%s0 + $0x20] sm:$0xff]
  %v33 = vld [vmem:[%s0 + $0x28] sm:$0xff]
  %v34 = vld [vmem:[%s0 + $0x30] sm:$0xff]
  %v35 = vld [vmem:[%s0 + $0x38] sm:$0xff]
  %v36 = vld [vmem:[%s0 + $0x40] sm:$0xff]
  %v37 = vld [vmem:[%s0 + $0x48] sm:$0xff]
  %v38 = vld [vmem:[%s0 + $0x50] sm:$0xff]
  %v39 = vld [vmem:[%s0 + $0x58] sm:$0xff]
  %v40 = vld [vmem:[%s0 + $0x60] sm:$0xff]
  %v41 = vld [vmem:[%s0 + $0x68] sm:$0xff]
  %v42 = vld [vmem:[%s0 + $0x70] sm:$0xff]
  %v43 = vld [vmem:[%s0 + $0x78] sm:$0xff]
  %v44 = vld [vmem:[%s0 + $0x80] sm:$0xff]
  %v45 = vld [vmem:[%s0 + $0x88] sm:$0xff]
  %v46 = vld [vmem:[%s0 + $0x90] sm:$0xff]
  %v47 = vld [vmem:[%s0 + $0x98] sm:$0xff]
  %v48 = vld [vmem:[%s0 + $0xa0] sm:$0xff]
  %v49 = vld [vmem:[%s0 + $0xa8] sm:$0xff]
  %v50 = vld [vmem:[%s0 + $0xb0] sm:$0xff]
  %v51 = vld [vmem:[%s0 + $0xb8] sm:$0xff]
  %v52 = vld [vmem:[%s0 + $0xc0] sm:$0xff]
  %v53 = vld [vmem:[%s0 + $0xc8] sm:$0xff]
  %v54 = vld [vmem:[%s0 + $0xd0] sm:$0xff]
  %v55 = vld [vmem:[%s0 + $0xd8] sm:$0xff]
  %v56 = vld [vmem:[%s0 + $0xe0] sm:$0xff]
  %v57 = vld [vmem:[%s0 + $0xe8] sm:$0xff]
  %v58 = vld [vmem:[%s0 + $0xf0] sm:$0xff]
  %v59 = vld [vmem:[%s0 + $0xf8] sm:$0xff]
  %v60 = vld [vmem:[%s0 + $0x100] sm:$0xff]
  %v61 = vld [vmem:[%s0 + $0x108] sm:$0xff]
  %v62 = vld [vmem:[%s0 + $0x110] sm:$0xff]
  %v63 = vld [vmem:[%s0 + $0x118] sm:$0xff]
  %v64 = vld [vmem:[%s0 + $0x120] sm:$0xff]
  %v65 = vld [vmem:[%s0 + $0x128] sm:$0xff]
  %v66 = vld [vmem:[%s0 + $0x130] sm:$0xff]
  %v67 = vld [vmem:[%s0 + $0x138] sm:$0xff]
  %v68 = vld [vmem:[%s0 + $0x140] sm:$0xff]
  %v69 = vld [vmem:[%s0 + $0x148] sm:$0xff]
  %v70 = vld [vmem:[%s0 + $0x150] sm:$0xff]
  %v71 = vld [vmem:[%s0 + $0x158] sm:$0xff]
  %v72 = vld [vmem:[%s0 + $0x160] sm:$0xff]
  %v73 = vld [vmem:[%s0 + $0x168] sm:$0xff]
  %v74 = vld [vmem:[%s0 + $0x170] sm:$0xff]
  %v75 = vld [vmem:[%s0 + $0x178] sm:$0xff]
  %v76 = vld [vmem:[%s0 + $0x180] sm:$0xff]
  %v77 = vld [vmem:[%s0 + $0x188] sm:$0xff]
  %v78 = vld [vmem:[%s0 + $0x190] sm:$0xff]
  %v79 = vld [vmem:[%s0 + $0x198] sm:$0xff]
  %v80 = vld [vmem:[%s0 + $0x1a0] sm:$0xff]
  %v81 = vld [vmem:[%s0 + $0x1a8] sm:$0xff]
  %v82 = vld [vmem:[%s0 + $0x1b0] sm:$0xff]
  %v83 = vld [vmem:[%s0 + $0x1b8] sm:$0xff]
  %v84 = vld [vmem:[%s0 + $0x1c0] sm:$0xff]
  %v85 = vld [vmem:[%s0 + $0x1c8] sm:$0xff]
  %v86 = vld [vmem:[%s0 + $0x1d0] sm:$0xff]
  %v87 = vld [vmem:[%s0 + $0x1d8] sm:$0xff]
  %v88 = vld [vmem:[%s0 + $0x1e0] sm:$0xff]
  %v89 = vld [vmem:[%s0 + $0x1e8] sm:$0xff]
  %v90 = vld [vmem:[%s0 + $0x1f0] sm:$0xff]
  %v91 = vld [vmem:[%s0 + $0x1f8] sm:$0xff]
  %93 = vset.pattern.permute.xlu0 0
  %94 = vperm.xlu0 %93, %v24
  %v95 = vpop.permute.xlu0 %94
  %98 = vset.pattern.permute.xlu0 0
  %99 = vperm.xlu0 %98, %v25
  %v100 = vpop.permute.xlu0 %99
  %vm102 = vcmask 80896
  %v104 = vsel %vm102, %v22, 0
  %v107 = vsel %vm102, %v23, 0
  %v110 = vsel %vm102, %v28, 0
  %v113 = vsel %vm102, %v29, 0
  %v116 = vsel %vm102, %v30, 0
  %v119 = vsel %vm102, %v31, 0
  %v122 = vsel %vm102, %v32, 0
  %v125 = vsel %vm102, %v33, 0
  %v128 = vsel %vm102, %v34, 0
  %v131 = vsel %vm102, %v35, 0
  %v134 = vsel %vm102, %v36, 0
  %v137 = vsel %vm102, %v37, 0
  %v140 = vsel %vm102, %v38, 0
  %v143 = vsel %vm102, %v39, 0
  %v146 = vsel %vm102, %v40, 0
  %v149 = vsel %vm102, %v41, 0
  %v152 = vsel %vm102, %v42, 0
  %v155 = vsel %vm102, %v43, 0
  %v158 = vsel %vm102, %v44, 0
  %v161 = vsel %vm102, %v45, 0
  %v164 = vsel %vm102, %v46, 0
  %v167 = vsel %vm102, %v47, 0
  %v170 = vsel %vm102, %v48, 0
  %v173 = vsel %vm102, %v49, 0
  %v176 = vsel %vm102, %v50, 0
  %v179 = vsel %vm102, %v51, 0
  %v182 = vsel %vm102, %v52, 0
  %v185 = vsel %vm102, %v53, 0
  %v188 = vsel %vm102, %v54, 0
  %v191 = vsel %vm102, %v55, 0
  %v194 = vsel %vm102, %v56, 0
  %v197 = vsel %vm102, %v57, 0
  %v200 = vsel %vm102, %v58, 0
  %v203 = vsel %vm102, %v59, 0
  %v206 = vsel %vm102, %v60, 0
  %v209 = vsel %vm102, %v61, 0
  %v212 = vsel %vm102, %v62, 0
  %v215 = vsel %vm102, %v63, 0
  %v218 = vsel %vm102, %v64, 0
  %v221 = vsel %vm102, %v65, 0
  %v224 = vsel %vm102, %v66, 0
  %v227 = vsel %vm102, %v67, 0
  %v230 = vsel %vm102, %v68, 0
  %v233 = vsel %vm102, %v69, 0
  %v236 = vsel %vm102, %v70, 0
  %v239 = vsel %vm102, %v71, 0
  %v242 = vsel %vm102, %v72, 0
  %v245 = vsel %vm102, %v73, 0
  %v248 = vsel %vm102, %v74, 0
  %v251 = vsel %vm102, %v75, 0
  %v254 = vsel %vm102, %v76, 0
  %v257 = vsel %vm102, %v77, 0
  %v260 = vsel %vm102, %v78, 0
  %v263 = vsel %vm102, %v79, 0
  %v266 = vsel %vm102, %v80, 0
  %v269 = vsel %vm102, %v81, 0
  %v272 = vsel %vm102, %v82, 0
  %v275 = vsel %vm102, %v83, 0
  %v278 = vsel %vm102, %v84, 0
  %v281 = vsel %vm102, %v85, 0
  %v284 = vsel %vm102, %v86, 0
  %v287 = vsel %vm102, %v87, 0
  %v290 = vsel %vm102, %v88, 0
  %v293 = vsel %vm102, %v89, 0
  %v296 = vsel %vm102, %v90, 0
  %v299 = vsel %vm102, %v91, 0
  %301 = vmatprep.subr.mxu0 0.0
  %302 = vmatpush1.xpose.msra.mxu0 %v155
  %303 = vmatprep.subr.mxu0 0.0
  %304 = vmatpush1.xpose.msra.mxu0 %v152
  %305 = vmatprep.subr.mxu0 0.0
  %306 = vmatpush1.xpose.msra.mxu0 %v149
  %307 = vmatprep.subr.mxu0 0.0
  %308 = vmatpush1.xpose.msra.mxu0 %v146
  %309 = vmatprep.subr.mxu0 0.0
  %310 = vmatpush1.xpose.msra.mxu0 %v143
  %311 = vmatprep.subr.mxu0 0.0
  %312 = vmatpush1.xpose.msra.mxu0 %v140
  %313 = vmatprep.subr.mxu0 0.0
  %314 = vmatpush1.xpose.msra.mxu0 %v137
  %315 = vmatprep.subr.mxu0 0.0
  %316 = vmatpush1.xpose.msra.mxu0 %v134
  %317 = vmatprep.subr.mxu0 0.0
  %318 = vmatpush1.xpose.msra.mxu0 %v131
  %319 = vmatprep.subr.mxu0 0.0
  %320 = vmatpush1.xpose.msra.mxu0 %v128
  %321 = vmatprep.subr.mxu0 0.0
  %322 = vmatpush1.xpose.msra.mxu0 %v125
  %323 = vmatprep.subr.mxu0 0.0
  %324 = vmatpush1.xpose.msra.mxu0 %v122
  %325 = vmatprep.subr.mxu0 0.0
  %326 = vmatpush1.xpose.msra.mxu0 %v119
  %327 = vmatprep.subr.mxu0 0.0
  %328 = vmatpush1.xpose.msra.mxu0 %v116
  %329 = vmatprep.subr.mxu0 0.0
  %330 = vmatpush1.xpose.msra.mxu0 %v113
  %331 = vmatprep.subr.mxu0 0.0
  %332 = vmatpush1.xpose.msra.mxu0 %v110
  %333 = vmatprep.subr.mxu0 0.0
  %334 = vmatpush2.xpose.msra.mxu0 %v203
  %335 = vmatprep.subr.mxu0 0.0
  %336 = vmatpush2.xpose.msra.mxu0 %v200
  %337 = vmatprep.subr.mxu0 0.0
  %338 = vmatpush2.xpose.msra.mxu0 %v197
  %339 = vmatprep.subr.mxu0 0.0
  %340 = vmatpush2.xpose.msra.mxu0 %v194
  %341 = vmatprep.subr.mxu0 0.0
  %342 = vmatpush2.xpose.msra.mxu0 %v191
  %343 = vmatprep.subr.mxu0 0.0
  %344 = vmatpush2.xpose.msra.mxu0 %v188
  %345 = vmatprep.subr.mxu0 0.0
  %346 = vmatpush2.xpose.msra.mxu0 %v185
  %347 = vmatprep.subr.mxu0 0.0
  %348 = vmatpush2.xpose.msra.mxu0 %v182
  %349 = vmatprep.subr.mxu0 0.0
  %350 = vmatpush2.xpose.msra.mxu0 %v179
  %351 = vmatprep.subr.mxu0 0.0
  %352 = vmatpush2.xpose.msra.mxu0 %v176
  %353 = vmatprep.subr.mxu0 0.0
  %354 = vmatpush2.xpose.msra.mxu0 %v173
  %355 = vmatprep.subr.mxu0 0.0
  %356 = vmatpush2.xpose.msra.mxu0 %v170
  %357 = vmatprep.subr.mxu0 0.0
  %358 = vmatpush2.xpose.msra.mxu0 %v167
  %359 = vmatprep.subr.mxu0 0.0
  %360 = vmatpush2.xpose.msra.mxu0 %v164
  %361 = vmatprep.subr.mxu0 0.0
  %362 = vmatpush2.xpose.msra.mxu0 %v161
  %363 = vmatprep.subr.mxu0 0.0
  %364 = vmatpush2.xpose.msra.mxu0 %v158
  %365 = vmatprep.mubr.f32.mxu0 0.0
  %366 = vmatmul.mubr.f32.gmra.mxu0 %v104
  %v367 = vpop.f32.mrf.mxu0
  %v368 = vadd.f32 %v95, %v367
  %v369 = vpop.f32.mrf.mxu0
  %v370 = vadd.f32 %v95, %v369
  %371 = vmatprep.mubr.f32.mxu0 0.0
  %372 = vmatmul.mubr.f32.gmra.mxu0 %v107
  %v373 = vpop.f32.mrf.mxu0
  %v374 = vadd.f32 %v100, %v373
  %v375 = vpop.f32.mrf.mxu0
  %v376 = vadd.f32 %v100, %v375
  %377 = vdwg.mxu0
  %378 = vmatprep.subr.mxu0 0.0
  %379 = vmatpush1.xpose.msra.mxu0 %v251
  %380 = vmatprep.subr.mxu0 0.0
  %381 = vmatpush1.xpose.msra.mxu0 %v248
  %382 = vmatprep.subr.mxu0 0.0
  %383 = vmatpush1.xpose.msra.mxu0 %v245
  %384 = vmatprep.subr.mxu0 0.0
  %385 = vmatpush1.xpose.msra.mxu0 %v242
  %386 = vmatprep.subr.mxu0 0.0
  %387 = vmatpush1.xpose.msra.mxu0 %v239
  %388 = vmatprep.subr.mxu0 0.0
  %389 = vmatpush1.xpose.msra.mxu0 %v236
  %390 = vmatprep.subr.mxu0 0.0
  %391 = vmatpush1.xpose.msra.mxu0 %v233
  %392 = vmatprep.subr.mxu0 0.0
  %393 = vmatpush1.xpose.msra.mxu0 %v230
  %394 = vmatprep.subr.mxu0 0.0
  %395 = vmatpush1.xpose.msra.mxu0 %v227
  %396 = vmatprep.subr.mxu0 0.0
  %397 = vmatpush1.xpose.msra.mxu0 %v224
  %398 = vmatprep.subr.mxu0 0.0
  %399 = vmatpush1.xpose.msra.mxu0 %v221
  %400 = vmatprep.subr.mxu0 0.0
  %401 = vmatpush1.xpose.msra.mxu0 %v218
  %402 = vmatprep.subr.mxu0 0.0
  %403 = vmatpush1.xpose.msra.mxu0 %v215
  %404 = vmatprep.subr.mxu0 0.0
  %405 = vmatpush1.xpose.msra.mxu0 %v212
  %406 = vmatprep.subr.mxu0 0.0
  %407 = vmatpush1.xpose.msra.mxu0 %v209
  %408 = vmatprep.subr.mxu0 0.0
  %409 = vmatpush1.xpose.msra.mxu0 %v206
  %410 = vmatprep.subr.mxu0 0.0
  %411 = vmatpush2.xpose.msra.mxu0 %v299
  %412 = vmatprep.subr.mxu0 0.0
  %413 = vmatpush2.xpose.msra.mxu0 %v296
  %414 = vmatprep.subr.mxu0 0.0
  %415 = vmatpush2.xpose.msra.mxu0 %v293
  %416 = vmatprep.subr.mxu0 0.0
  %417 = vmatpush2.xpose.msra.mxu0 %v290
  %418 = vmatprep.subr.mxu0 0.0
  %419 = vmatpush2.xpose.msra.mxu0 %v287
  %420 = vmatprep.subr.mxu0 0.0
  %421 = vmatpush2.xpose.msra.mxu0 %v284
  %422 = vmatprep.subr.mxu0 0.0
  %423 = vmatpush2.xpose.msra.mxu0 %v281
  %424 = vmatprep.subr.mxu0 0.0
  %425 = vmatpush2.xpose.msra.mxu0 %v278
  %426 = vmatprep.subr.mxu0 0.0
  %427 = vmatpush2.xpose.msra.mxu0 %v275
  %428 = vmatprep.subr.mxu0 0.0
  %429 = vmatpush2.xpose.msra.mxu0 %v272
  %430 = vmatprep.subr.mxu0 0.0
  %431 = vmatpush2.xpose.msra.mxu0 %v269
  %432 = vmatprep.subr.mxu0 0.0
  %433 = vmatpush2.xpose.msra.mxu0 %v266
  %434 = vmatprep.subr.mxu0 0.0
  %435 = vmatpush2.xpose.msra.mxu0 %v263
  %436 = vmatprep.subr.mxu0 0.0
  %437 = vmatpush2.xpose.msra.mxu0 %v260
  %438 = vmatprep.subr.mxu0 0.0
  %439 = vmatpush2.xpose.msra.mxu0 %v257
  %440 = vmatprep.subr.mxu0 0.0
  %441 = vmatpush2.xpose.msra.mxu0 %v254
  %442 = vmatprep.mubr.f32.mxu0 0.0
  %443 = vmatmul.mubr.f32.gmra.mxu0 %v104
  %v444 = vpop.f32.mrf.mxu0
  %v445 = vadd.f32 %v95, %v444
  %v446 = vpop.f32.mrf.mxu0
  %v447 = vadd.f32 %v95, %v446
  %448 = vmatprep.mubr.f32.mxu0 0.0
  %449 = vmatmul.mubr.f32.gmra.mxu0 %v107
  %v450 = vpop.f32.mrf.mxu0
  %v451 = vadd.f32 %v100, %v450
  %v452 = vpop.f32.mrf.mxu0
  %v453 = vadd.f32 %v100, %v452
  %454 = vdwg.mxu0
  %v455 = vmax.f32 %v368, 0.0
  %v456 = vmax.f32 %v370, 0.0
  %v457 = vmax.f32 %v445, 0.0
  %v458 = vmax.f32 %v447, 0.0
  %v459 = vmax.f32 %v374, 0.0
  %v460 = vmax.f32 %v376, 0.0
  %v461 = vmax.f32 %v451, 0.0
  %v462 = vmax.f32 %v453, 0.0
  %464 = vset.pattern.permute.xlu0 0
  %465 = vperm.xlu0 %464, %v27
  %v466 = vpop.permute.xlu0 %465
  %v468 = vlaneseq
  %v469 = vshrl.u32 %v468, 7
  %v470 = vsub.s32 0, %v469
  %v471 = vrot.slane %v466, %v470
  %v473 = vsel %vm102, %v26, 0
  %vm475 = vcmask 1041408
  %v477 = vsel %vm475, %v459, 0
  %v480 = vsel %vm475, %v460, 0
  %v483 = vsel %vm475, %v461, 0
  %v486 = vsel %vm475, %v462, 0
  %488 = vmatprep.subr.mxu0 0.0
  %489 = vmatpush1.msra.mxu0 0.0
  %490 = vmatprep.subr.mxu0 0.0
  %491 = vmatpush1.msra.mxu0 0.0
  %492 = vmatprep.subr.mxu0 0.0
  %493 = vmatpush1.msra.mxu0 0.0
  %494 = vmatprep.subr.mxu0 0.0
  %495 = vmatpush1.msra.mxu0 0.0
  %496 = vmatprep.subr.mxu0 0.0
  %497 = vmatpush1.msra.mxu0 0.0
  %498 = vmatprep.subr.mxu0 0.0
  %499 = vmatpush1.msra.mxu0 0.0
  %500 = vmatprep.subr.mxu0 0.0
  %501 = vmatpush1.msra.mxu0 0.0
  %502 = vmatprep.subr.mxu0 0.0
  %503 = vmatpush1.msra.mxu0 0.0
  %504 = vmatprep.subr.mxu0 0.0
  %505 = vmatpush1.msra.mxu0 0.0
  %506 = vmatprep.subr.mxu0 0.0
  %507 = vmatpush1.msra.mxu0 0.0
  %508 = vmatprep.subr.mxu0 0.0
  %509 = vmatpush1.msra.mxu0 0.0
  %510 = vmatprep.subr.mxu0 0.0
  %511 = vmatpush1.msra.mxu0 0.0
  %512 = vmatprep.subr.mxu0 0.0
  %513 = vmatpush1.msra.mxu0 0.0
  %514 = vmatprep.subr.mxu0 0.0
  %515 = vmatpush1.msra.mxu0 0.0
  %516 = vmatprep.subr.mxu0 %v480
  %517 = vmatpush1.msra.mxu0 %v477
  %518 = vmatprep.subr.mxu0 %v456
  %519 = vmatpush1.msra.mxu0 %v455
  %520 = vmatprep.subr.mxu0 0.0
  %521 = vmatpush2.msra.mxu0 0.0
  %522 = vmatprep.subr.mxu0 0.0
  %523 = vmatpush2.msra.mxu0 0.0
  %524 = vmatprep.subr.mxu0 0.0
  %525 = vmatpush2.msra.mxu0 0.0
  %526 = vmatprep.subr.mxu0 0.0
  %527 = vmatpush2.msra.mxu0 0.0
  %528 = vmatprep.subr.mxu0 0.0
  %529 = vmatpush2.msra.mxu0 0.0
  %530 = vmatprep.subr.mxu0 0.0
  %531 = vmatpush2.msra.mxu0 0.0
  %532 = vmatprep.subr.mxu0 0.0
  %533 = vmatpush2.msra.mxu0 0.0
  %534 = vmatprep.subr.mxu0 0.0
  %535 = vmatpush2.msra.mxu0 0.0
  %536 = vmatprep.subr.mxu0 0.0
  %537 = vmatpush2.msra.mxu0 0.0
  %538 = vmatprep.subr.mxu0 0.0
  %539 = vmatpush2.msra.mxu0 0.0
  %540 = vmatprep.subr.mxu0 0.0
  %541 = vmatpush2.msra.mxu0 0.0
  %542 = vmatprep.subr.mxu0 0.0
  %543 = vmatpush2.msra.mxu0 0.0
  %544 = vmatprep.subr.mxu0 0.0
  %545 = vmatpush2.msra.mxu0 0.0
  %546 = vmatprep.subr.mxu0 0.0
  %547 = vmatpush2.msra.mxu0 0.0
  %548 = vmatprep.subr.mxu0 0.0
  %549 = vmatpush2.msra.mxu0 0.0
  %550 = vmatprep.subr.mxu0 0.0
  %551 = vmatpush2.msra.mxu0 0.0
  %552 = vmatprep.mubr.f32.mxu0 0.0
  %553 = vmatmul.mubr.f32.gmra.mxu0 %v473
  %v554 = vpop.f32.mrf.mxu0
  %v555 = vadd.f32 %v471, %v554
  %v556 = vpop.f32.mrf.mxu0
  %v557 = vadd.f32 %v471, %v556
  %558 = vdwg.mxu0
  %559 = vmatprep.subr.mxu0 0.0
  %560 = vmatpush1.msra.mxu0 0.0
  %561 = vmatprep.subr.mxu0 0.0
  %562 = vmatpush1.msra.mxu0 0.0
  %563 = vmatprep.subr.mxu0 0.0
  %564 = vmatpush1.msra.mxu0 0.0
  %565 = vmatprep.subr.mxu0 0.0
  %566 = vmatpush1.msra.mxu0 0.0
  %567 = vmatprep.subr.mxu0 0.0
  %568 = vmatpush1.msra.mxu0 0.0
  %569 = vmatprep.subr.mxu0 0.0
  %570 = vmatpush1.msra.mxu0 0.0
  %571 = vmatprep.subr.mxu0 0.0
  %572 = vmatpush1.msra.mxu0 0.0
  %573 = vmatprep.subr.mxu0 0.0
  %574 = vmatpush1.msra.mxu0 0.0
  %575 = vmatprep.subr.mxu0 0.0
  %576 = vmatpush1.msra.mxu0 0.0
  %577 = vmatprep.subr.mxu0 0.0
  %578 = vmatpush1.msra.mxu0 0.0
  %579 = vmatprep.subr.mxu0 0.0
  %580 = vmatpush1.msra.mxu0 0.0
  %581 = vmatprep.subr.mxu0 0.0
  %582 = vmatpush1.msra.mxu0 0.0
  %583 = vmatprep.subr.mxu0 0.0
  %584 = vmatpush1.msra.mxu0 0.0
  %585 = vmatprep.subr.mxu0 0.0
  %586 = vmatpush1.msra.mxu0 0.0
  %587 = vmatprep.subr.mxu0 %v486
  %588 = vmatpush1.msra.mxu0 %v483
  %589 = vmatprep.subr.mxu0 %v458
  %590 = vmatpush1.msra.mxu0 %v457
  %591 = vmatprep.subr.mxu0 0.0
  %592 = vmatpush2.msra.mxu0 0.0
  %593 = vmatprep.subr.mxu0 0.0
  %594 = vmatpush2.msra.mxu0 0.0
  %595 = vmatprep.subr.mxu0 0.0
  %596 = vmatpush2.msra.mxu0 0.0
  %597 = vmatprep.subr.mxu0 0.0
  %598 = vmatpush2.msra.mxu0 0.0
  %599 = vmatprep.subr.mxu0 0.0
  %600 = vmatpush2.msra.mxu0 0.0
  %601 = vmatprep.subr.mxu0 0.0
  %602 = vmatpush2.msra.mxu0 0.0
  %603 = vmatprep.subr.mxu0 0.0
  %604 = vmatpush2.msra.mxu0 0.0
  %605 = vmatprep.subr.mxu0 0.0
  %606 = vmatpush2.msra.mxu0 0.0
  %607 = vmatprep.subr.mxu0 0.0
  %608 = vmatpush2.msra.mxu0 0.0
  %609 = vmatprep.subr.mxu0 0.0
  %610 = vmatpush2.msra.mxu0 0.0
  %611 = vmatprep.subr.mxu0 0.0
  %612 = vmatpush2.msra.mxu0 0.0
  %613 = vmatprep.subr.mxu0 0.0
  %614 = vmatpush2.msra.mxu0 0.0
  %615 = vmatprep.subr.mxu0 0.0
  %616 = vmatpush2.msra.mxu0 0.0
  %617 = vmatprep.subr.mxu0 0.0
  %618 = vmatpush2.msra.mxu0 0.0
  %619 = vmatprep.subr.mxu0 0.0
  %620 = vmatpush2.msra.mxu0 0.0
  %621 = vmatprep.subr.mxu0 0.0
  %622 = vmatpush2.msra.mxu0 0.0
  %623 = vmatprep.mubr.f32.mxu0 0.0
  %624 = vmatmul.mubr.f32.gmra.mxu0 %v473
  %v625 = vpop.f32.mrf.mxu0
  %v626 = vadd.f32 %v471, %v625
  %v627 = vpop.f32.mrf.mxu0
  %v628 = vadd.f32 %v471, %v627
  %629 = vdwg.mxu0
  %v630 = vmax.f32 %v555, 0.0
  %v631 = vmax.f32 %v557, 0.0
  %v632 = vmax.f32 %v626, 0.0
  %v633 = vmax.f32 %v628, 0.0
  %v638 = vcombine.low %v630, %v631
  %v639 = vcombine.low %v632, %v633
  %v641 = vunpack.c.l.s4 1966171168
  %v642 = vunpack.c.0.s8 %v641
  %v643 = vlaneseq
  %v644 = vshrl.u32 %v643, 7
  %v645 = vsub.s32 %v642, %v644
  %v646 = vrot.slane %v638, %v645
  %v648 = vunpack.c.l.s4 1966171168
  %v649 = vunpack.c.0.s8 %v648
  %v650 = vlaneseq
  %v651 = vshrl.u32 %v650, 7
  %v652 = vsub.s32 %v649, %v651
  %v653 = vrot.slane %v639, %v652
  %v654 = vcombine.low %v646, %v653
  %v656 = vunpack.c.l.s4 1966171168
  %v657 = vunpack.c.0.s8 %v656
  %v658 = vlaneseq
  %v659 = vshrl.u32 %v658, 7
  %v660 = vsub.s32 %v657, %v659
  %v661 = vrot.slane %v654, %v660
  %v663 = vlaneseq
  %vm664 = vcmp.ge.s32.totalorder %v663, 0
  %vm665 = vcmp.lt.s32.totalorder %v663, 512
  %vm666 = vmand %vm664, %vm665
  %667 = vst.msk [vmem:[%s5] sm:$0xf] %vm666, %v661
  // Predicated region
  $region22: #{digitsum_image_rho.1} parent=0 // pred_check
    _
  $region23: #{digitsum_image_rho.1} parent=0 // pred_check_branch
    %669 = sbr.rel (0) target = $region25
  $region24: #{digitsum_image_rho.1} parent=0 // pred_region
    _
  $region25: #{digitsum_image_rho.1} parent=0 // pred_fallthru
    _
  // Predicated region
  $region26: #{digitsum_image_rho.1} parent=0 // pred_check
    _
  $region27: #{digitsum_image_rho.1} parent=0 // pred_check_branch
    %671 = sbr.rel (0) target = $region29
  $region28: #{digitsum_image_rho.1} parent=0 // pred_region
    _
  $region29: #{digitsum_image_rho.1} parent=0 // pred_fallthru
    _

</llo_original>
